<compile_context>
chip_gen: v7x
topology: tpu7x:2x2x1
jax: 0.10.0
libtpu: 0.0.40
codegen_flags: <defaults>
</compile_context>

<pallas_src>
import functools
import math

import jax
import jax.numpy as jnp
from jax.experimental import pallas as pl
from jax.experimental.pallas import tpu as pltpu


def _round_up(a, b):
    return (a + b - 1) // b * b


def _xlogx(v):
    v = float(v)
    return v * math.log(v) if v > 0.0 else 0.0


def _label_smoothing_kernel(x_ref, t_ref, o_ref, acc_ref, *,
                            a_coef, b_coef, ent_row, num_classes,
                            ignore_index, ignore_active,
                            spatial_valid, needs_mask):
    j = pl.program_id(1)

    # (Re-)initialize the per-lane accumulator at the start of each batch element.
    @pl.when(j == 0)
    def _():
        acc_ref[...] = jnp.zeros_like(acc_ref)

    x = x_ref[0].astype(jnp.float32)      # (C, TS) logits tile, classes on sublanes
    t = t_ref[0]                          # (1, TS) int32 targets

    c, ts = x.shape

    # log-softmax pieces over the class (sublane) axis.
    m = jnp.max(x, axis=0, keepdims=True)                                  # (1, TS)
    lse = jnp.log(jnp.sum(jnp.exp(x - m), axis=0, keepdims=True)) + m      # (1, TS)
    sum_logp = jnp.sum(x, axis=0, keepdims=True) - num_classes * lse       # (1, TS)

    # logp at the target class via a one-hot masked reduce (no scatter / gather).
    cls = jax.lax.broadcasted_iota(jnp.int32, (c, ts), 0)
    x_t = jnp.sum(jnp.where(cls == t, x, 0.0), axis=0, keepdims=True)      # (1, TS)
    logp_t = x_t - lse

    # sum_c smoothed * logp, collapsed algebraically (smoothed never materialized).
    cross = a_coef * sum_logp + b_coef * logp_t
    if ignore_active:
        x_ig = jnp.sum(jnp.where(cls == ignore_index, x, 0.0),
                       axis=0, keepdims=True)
        cross = cross - a_coef * (x_ig - lse)

    # KL per spatial position: sum_c p*log(p) - sum_c p*logp  (entropy is constant).
    contrib = ent_row - cross                                              # (1, TS)

    if ignore_active:
        contrib = jnp.where(t == ignore_index, 0.0, contrib)
    if needs_mask:
        col = jax.lax.broadcasted_iota(jnp.int32, (1, ts), 1) + j * ts
        contrib = jnp.where(col < spatial_valid, contrib, 0.0)

    # Pure elementwise per-lane accumulation (no per-step scalar reduction / store).
    acc_ref[...] += contrib

    # Final cross-lane reduction + store once per batch element.
    @pl.when(j == pl.num_programs(1) - 1)
    def _():
        o_ref[...] = jnp.sum(acc_ref[...]).reshape(1, 1, 1)


def label_smoothing_loss(inputs, targets, *, smoothing=0.0, ignore_index=-1,
                         reduction='sum', tile_bytes=4 * 1024 * 1024):
    """inputs: (B, C, *spatial) float, targets: (B, *spatial) int. Returns scalar loss."""
    assert reduction == 'sum', "only the module default reduction='sum' is implemented"
    # TODO(synk): reduction='mean'/'batchmean'/'none' are wrapper-level rescales, not added here.

    bsz = int(inputs.shape[0])
    nclass = int(inputs.shape[1])

    if inputs.ndim >= 3:
        s_true = int(math.prod(inputs.shape[2:]))
        x3 = inputs.reshape(bsz, nclass, s_true)          # free reshape, no transpose
        t3 = targets.reshape(bsz, 1, s_true).astype(jnp.int32)
        nb = bsz
    else:
        # (N, C) inputs: put classes on sublanes via a single transpose.
        # TODO(synk): a dedicated classes-on-lanes kernel would avoid this transpose.
        s_true = bsz
        x3 = inputs.T.reshape(1, nclass, s_true)
        t3 = targets.reshape(1, 1, s_true).astype(jnp.int32)
        nb = 1

    itemsize = jnp.dtype(inputs.dtype).itemsize

    # Spatial tile: lane-dense (multiple of 128) and sized so one logits tile stays
    # around `tile_bytes` (double-buffered it is still safe on v7x's 64 MiB VMEM).
    ts_cap = max(128, (int(tile_bytes) // (nclass * itemsize)) // 128 * 128)
    if s_true >= 128:
        ts = min(ts_cap, _round_up(s_true, 128))
    else:
        ts = s_true                      # full-extent block, no 128 constraint needed
    s_pad = _round_up(s_true, ts)
    # TODO(synk): class counts so large that a (C, 128) tile exceeds VMEM would need a
    # two-pass (tiled-C) softmax; not implemented here.

    needs_mask = s_pad != s_true
    if needs_mask:
        pad = s_pad - s_true
        fill = int(ignore_index) if 0 <= int(ignore_index) < nclass else 0
        x3 = jnp.pad(x3, ((0, 0), (0, 0), (0, pad)))
        t3 = jnp.pad(t3, ((0, 0), (0, 0), (0, pad)), constant_values=fill)

    smoothing = float(smoothing)
    ignore_active = 0 <= int(ignore_index) < nclass
    a_coef = smoothing / nclass
    b_coef = 1.0 - smoothing - a_coef
    n_uniform = max(0, nclass - (2 if ignore_active else 1))
    ent_row = _xlogx(1.0 - smoothing) + n_uniform * _xlogx(a_coef)

    # VMEM budget: double-buffered logits+targets tiles + accumulator, clamped to the
    # chip's physical VMEM (v7x: 64 MiB; v5e/v6e: 128 MiB but 16/32 MiB scoped default).
    try:
        vmem_cap = int(pltpu.get_tpu_info().vmem_capacity_bytes)
    except Exception:
        vmem_cap = 64 * 1024 * 1024
    need = 2 * (nclass * ts * itemsize + ts * 4) + 8 * ts * 4 + (2 << 20)
    vmem_limit = int(min(max(need, 32 << 20), int(vmem_cap * 0.9)))

    kernel = functools.partial(
        _label_smoothing_kernel,
        a_coef=a_coef, b_coef=b_coef, ent_row=ent_row, num_classes=nclass,
        ignore_index=int(ignore_index), ignore_active=ignore_active,
        spatial_valid=int(s_true), needs_mask=needs_mask)

    partials = pl.pallas_call(
        kernel,
        out_shape=jax.ShapeDtypeStruct((nb, 1, 1), jnp.float32),
        grid_spec=pltpu.PrefetchScalarGridSpec(
            num_scalar_prefetch=0,
            grid=(nb, s_pad // ts),
            in_specs=[
                pl.BlockSpec((1, nclass, ts), lambda i, j: (i, 0, j)),
                pl.BlockSpec((1, 1, ts), lambda i, j: (i, 0, j)),
            ],
            out_specs=pl.BlockSpec((1, 1, 1), lambda i, j: (i, 0, 0)),
            scratch_shapes=[pltpu.VMEM((1, ts), jnp.float32)],
        ),
        compiler_params=pltpu.CompilerParams(
            dimension_semantics=("parallel", "arbitrary"),
            vmem_limit_bytes=vmem_limit),
    )(x3, t3)
    return jnp.sum(partials)


def _reference_loss(inputs, targets, *, smoothing, ignore_index):
    """Pure-JAX reference mirroring the PyTorch module (reduction='sum')."""
    c = inputs.shape[1]
    logp = jax.nn.log_softmax(inputs.astype(jnp.float32), axis=1)
    onehot = jax.nn.one_hot(targets, c, axis=1, dtype=jnp.float32)
    smoothed = jnp.where(onehot > 0, 1.0 - smoothing, smoothing / c)
    if 0 <= ignore_index < c:
        cls = jnp.arange(c).reshape((1, c) + (1,) * (inputs.ndim - 2))
        smoothed = jnp.where(cls == ignore_index, 0.0, smoothed)
        smoothed = jnp.where(jnp.expand_dims(targets == ignore_index, 1), 0.0, smoothed)
    safe = jnp.where(smoothed > 0, smoothed, 1.0)
    elem = jnp.where(smoothed > 0, smoothed * jnp.log(safe), 0.0) - smoothed * logp
    return jnp.sum(elem)


if __name__ == "__main__":
    key = jax.random.PRNGKey(0)
    kx, kt, kx2, kt2 = jax.random.split(key, 4)

    # Case 1: NCHW with ignore_index active (B=2, C=32, H=8, W=8).
    B, C, H, W = 2, 32, 8, 8
    inputs = jax.random.normal(kx, (B, C, H, W), dtype=jnp.float32)
    targets = jax.random.randint(kt, (B, H, W), 0, C, dtype=jnp.int32)
    loss = label_smoothing_loss(inputs, targets, smoothing=0.1, ignore_index=3,
                                reduction='sum')
    loss = jax.block_until_ready(loss)
    ref = _reference_loss(inputs, targets, smoothing=0.1, ignore_index=3)
    assert jnp.allclose(loss, ref, rtol=2e-4, atol=1e-2), (loss, ref)

    # Case 2: ragged spatial size (exercises padding + lane masking), no ignore_index.
    B2, C2, H2, W2 = 2, 16, 10, 13
    inputs2 = jax.random.normal(kx2, (B2, C2, H2, W2), dtype=jnp.float32)
    targets2 = jax.random.randint(kt2, (B2, H2, W2), 0, C2, dtype=jnp.int32)
    loss2 = label_smoothing_loss(inputs2, targets2, smoothing=0.05, ignore_index=-1,
                                 reduction='sum')
    loss2 = jax.block_until_ready(loss2)
    ref2 = _reference_loss(inputs2, targets2, smoothing=0.05, ignore_index=-1)
    assert jnp.allclose(loss2, ref2, rtol=2e-4, atol=1e-2), (loss2, ref2)

    print("KERNEL_OK")
</pallas_src>

<mosaic_0001>
module attributes {stable_mosaic.version = 11 : i64} {
  func.func @_label_smoothing_kernel(%arg0: i32, %arg1: i32, %arg2: memref<1x32x64xf32, #tpu.memory_space<vmem>>, %arg3: memref<1x1x64xi32, #tpu.memory_space<vmem>>, %arg4: memref<1x1x1xf32, #tpu.memory_space<vmem>>, %arg5: memref<1x64xf32, #tpu.memory_space<vmem>>) attributes {dimension_semantics = [#tpu.dimension_semantics<parallel>, #tpu.dimension_semantics<arbitrary>], iteration_bounds = array<i64: 2, 1>, scalar_prefetch = 0 : i64, scratch_operands = 1 : i64, tpu.core_type = #tpu.core_type<tc>, window_params = [{transform_indices = @transform_0, window_bounds = array<i64: 1, 32, 64>}, {transform_indices = @transform_1, window_bounds = array<i64: 1, 1, 64>}, {transform_indices = @transform_2, window_bounds = array<i64: 1, 1, 1>}]} {
    %c0_i32 = arith.constant 0 : i32
    %0 = arith.cmpi eq, %arg1, %c0_i32 : i32
    %1 = arith.extui %0 : i1 to i32
    %c0_i32_0 = arith.constant 0 : i32
    %2 = arith.cmpi ne, %1, %c0_i32_0 : i32
    scf.if %2 {
      %cst_25 = arith.constant 0.000000e+00 : f32
      %56 = vector.broadcast %cst_25 : f32 to vector<1x64xf32>
      %c0_26 = arith.constant 0 : index
      %c0_27 = arith.constant 0 : index
      %57 = vector.load %arg5[%c0_26, %c0_27] : memref<1x64xf32, #tpu.memory_space<vmem>>, vector<1x64xf32>
      tpu.vector_store %arg5[%c0_26, %c0_27], %56 {strides = array<i32>} : memref<1x64xf32, #tpu.memory_space<vmem>>, vector<1x64xf32>,
    } else {
    }
    %c0 = arith.constant 0 : index
    %c0_1 = arith.constant 0 : index
    %c0_2 = arith.constant 0 : index
    %3 = vector.load %arg2[%c0, %c0_1, %c0_2] : memref<1x32x64xf32, #tpu.memory_space<vmem>>, vector<1x32x64xf32>
    %4 = vector.shape_cast %3 : vector<1x32x64xf32> to vector<32x64xf32>
    %c0_3 = arith.constant 0 : index
    %c0_4 = arith.constant 0 : index
    %c0_5 = arith.constant 0 : index
    %5 = vector.load %arg3[%c0_3, %c0_4, %c0_5] : memref<1x1x64xi32, #tpu.memory_space<vmem>>, vector<1x1x64xi32>
    %6 = vector.shape_cast %5 : vector<1x1x64xi32> to vector<1x64xi32>
    %cst = arith.constant dense<0xFF800000> : vector<64xf32>
    %7 = vector.multi_reduction <maximumf>, %4, %cst [0] : vector<32x64xf32> to vector<64xf32>
    %8 = vector.shape_cast %7 : vector<64xf32> to vector<1x64xf32>
    %9 = vector.broadcast %8 : vector<1x64xf32> to vector<32x64xf32>
    %10 = arith.subf %4, %9 : vector<32x64xf32>
    %11 = math.exp %10 : vector<32x64xf32>
    %cst_6 = arith.constant dense<0.000000e+00> : vector<64xf32>
    %12 = vector.multi_reduction <add>, %11, %cst_6 [0] : vector<32x64xf32> to vector<64xf32>
    %13 = vector.shape_cast %12 : vector<64xf32> to vector<1x64xf32>
    %14 = math.log %13 : vector<1x64xf32>
    %15 = arith.addf %14, %8 : vector<1x64xf32>
    %cst_7 = arith.constant dense<0.000000e+00> : vector<64xf32>
    %16 = vector.multi_reduction <add>, %4, %cst_7 [0] : vector<32x64xf32> to vector<64xf32>
    %17 = vector.shape_cast %16 : vector<64xf32> to vector<1x64xf32>
    %cst_8 = arith.constant 3.200000e+01 : f32
    %18 = vector.broadcast %cst_8 : f32 to vector<1x64xf32>
    %19 = arith.mulf %18, %15 : vector<1x64xf32>
    %20 = arith.subf %17, %19 : vector<1x64xf32>
    %21 = tpu.iota {dimensions = array<i32: 0>} : vector<32x64xi32>
    %22 = vector.broadcast %6 : vector<1x64xi32> to vector<32x64xi32>
    %23 = arith.cmpi eq, %21, %22 : vector<32x64xi32>
    %cst_9 = arith.constant 0.000000e+00 : f32
    %24 = vector.broadcast %cst_9 : f32 to vector<32x64xf32>
    %25 = arith.select %23, %4, %24 : vector<32x64xi1>, vector<32x64xf32>
    %cst_10 = arith.constant dense<0.000000e+00> : vector<64xf32>
    %26 = vector.multi_reduction <add>, %25, %cst_10 [0] : vector<32x64xf32> to vector<64xf32>
    %27 = vector.shape_cast %26 : vector<64xf32> to vector<1x64xf32>
    %28 = arith.subf %27, %15 : vector<1x64xf32>
    %cst_11 = arith.constant 3.125000e-03 : f32
    %29 = vector.broadcast %cst_11 : f32 to vector<1x64xf32>
    %30 = arith.mulf %29, %20 : vector<1x64xf32>
    %cst_12 = arith.constant 8.968750e-01 : f32
    %31 = vector.broadcast %cst_12 : f32 to vector<1x64xf32>
    %32 = arith.mulf %31, %28 : vector<1x64xf32>
    %33 = arith.addf %30, %32 : vector<1x64xf32>
    %c3_i32 = arith.constant 3 : i32
    %34 = vector.broadcast %c3_i32 : i32 to vector<32x64xi32>
    %35 = arith.cmpi eq, %21, %34 : vector<32x64xi32>
    %cst_13 = arith.constant 0.000000e+00 : f32
    %36 = vector.broadcast %cst_13 : f32 to vector<32x64xf32>
    %37 = arith.select %35, %4, %36 : vector<32x64xi1>, vector<32x64xf32>
    %cst_14 = arith.constant dense<0.000000e+00> : vector<64xf32>
    %38 = vector.multi_reduction <add>, %37, %cst_14 [0] : vector<32x64xf32> to vector<64xf32>
    %39 = vector.shape_cast %38 : vector<64xf32> to vector<1x64xf32>
    %40 = arith.subf %39, %15 : vector<1x64xf32>
    %cst_15 = arith.constant 3.125000e-03 : f32
    %41 = vector.broadcast %cst_15 : f32 to vector<1x64xf32>
    %42 = arith.mulf %41, %40 : vector<1x64xf32>
    %43 = arith.subf %33, %42 : vector<1x64xf32>
    %cst_16 = arith.constant -0.63560456 : f32
    %44 = vector.broadcast %cst_16 : f32 to vector<1x64xf32>
    %45 = arith.subf %44, %43 : vector<1x64xf32>
    %c3_i32_17 = arith.constant 3 : i32
    %46 = vector.broadcast %c3_i32_17 : i32 to vector<1x64xi32>
    %47 = arith.cmpi eq, %6, %46 : vector<1x64xi32>
    %cst_18 = arith.constant 0.000000e+00 : f32
    %48 = vector.broadcast %cst_18 : f32 to vector<1x64xf32>
    %49 = arith.select %47, %48, %45 : vector<1x64xi1>, vector<1x64xf32>
    %c0_19 = arith.constant 0 : index
    %c0_20 = arith.constant 0 : index
    %50 = vector.load %arg5[%c0_19, %c0_20] : memref<1x64xf32, #tpu.memory_space<vmem>>, vector<1x64xf32>
    %51 = arith.addf %50, %49 : vector<1x64xf32>
    %c0_21 = arith.constant 0 : index
    %c0_22 = arith.constant 0 : index
    %52 = vector.load %arg5[%c0_21, %c0_22] : memref<1x64xf32, #tpu.memory_space<vmem>>, vector<1x64xf32>
    tpu.vector_store %arg5[%c0_21, %c0_22], %51 {strides = array<i32>} : memref<1x64xf32, #tpu.memory_space<vmem>>, vector<1x64xf32>,
    %c0_i32_23 = arith.constant 0 : i32
    %53 = arith.cmpi eq, %arg1, %c0_i32_23 : i32
    %54 = arith.extui %53 : i1 to i32
    %c0_i32_24 = arith.constant 0 : i32
    %55 = arith.cmpi ne, %54, %c0_i32_24 : i32
    scf.if %55 {
      %c0_25 = arith.constant 0 : index
      %c0_26 = arith.constant 0 : index
      %56 = vector.load %arg5[%c0_25, %c0_26] : memref<1x64xf32, #tpu.memory_space<vmem>>, vector<1x64xf32>
      %57 = vector.shape_cast %56 : vector<1x64xf32> to vector<1x1x64xf32>
      %cst_27 = arith.constant dense<0.000000e+00> : vector<1xf32>
      %58 = vector.multi_reduction <add>, %57, %cst_27 [1, 2] : vector<1x1x64xf32> to vector<1xf32>
      %59 = vector.shape_cast %58 : vector<1xf32> to vector<1x1x1xf32>
      %60 = vector.extract %59[0, 0, 0] : f32 from vector<1x1x1xf32>
      %61 = vector.broadcast %60 : f32 to vector<1x1x1xf32>
      %c0_28 = arith.constant 0 : index
      %c0_29 = arith.constant 0 : index
      %c0_30 = arith.constant 0 : index
      %62 = vector.load %arg4[%c0_28, %c0_29, %c0_30] : memref<1x1x1xf32, #tpu.memory_space<vmem>>, vector<1x1x1xf32>
      tpu.vector_store %arg4[%c0_28, %c0_29, %c0_30], %61 {strides = array<i32>} : memref<1x1x1xf32, #tpu.memory_space<vmem>>, vector<1x1x1xf32>,
    } else {
    }
    return
  }
  func.func @transform_0(%arg0: i32, %arg1: i32) -> (i32, i32, i32) {
    %c0_i32 = arith.constant 0 : i32
    %c0_i32_0 = arith.constant 0 : i32
    return %arg0, %c0_i32, %arg1 : i32, i32, i32
  }
  func.func @transform_1(%arg0: i32, %arg1: i32) -> (i32, i32, i32) {
    %c0_i32 = arith.constant 0 : i32
    %c0_i32_0 = arith.constant 0 : i32
    return %arg0, %c0_i32, %arg1 : i32, i32, i32
  }
  func.func @transform_2(%arg0: i32, %arg1: i32) -> (i32, i32, i32) {
    %c0_i32 = arith.constant 0 : i32
    %c0_i32_0 = arith.constant 0 : i32
    %c0_i32_1 = arith.constant 0 : i32
    return %arg0, %c0_i32, %c0_i32_0 : i32, i32, i32
  }
}

</mosaic_0001>

<llo_original>
// kernel: tpu_custom_call.1
$region0: #{tpu_custom_call.1}
  #allocation0 [shape = 'u32[]', space=smem, size = 0x4, offset = 0x4, fixed_abs, tag = 'smem constant byte address 0x4 - core index']
  #allocation1 [shape = 'u32[144,128]{1,0:T(1,128)}', space=vmem, size = 0x12000, scoped, tag = 'internal scratch']
  #allocation2 [shape = 'f32[1,64]{1,0:T(1,128)}', space=vmem, size = 0x200, scoped, tag = 'scratch operand']
  %s0 = inlined_call_operand.hbm [shape: f32[2,32,64], index: 0, kind: input, shape index: {}]
  %s1 = inlined_call_operand.vmem [shape: s32[2,1,64], index: 1, kind: input, shape index: {}]
  %s2 = inlined_call_operand.vmem [shape: f32[2,1,1], index: 2, kind: output, shape index: {}]
  %s3 = sld [smem:[#allocation0]]
  $region53: #{tpu_custom_call.1} parent=0
    _
  %s5 = ssub.s32 1, %s3
  %s6 = scalar_select 0, %s5, %s3
  $region1: #{tpu_custom_call.1} parent=0
    #allocation3 [shape = 'u8[32768]{0}', space=vmem, size = 0x8000, scoped, tag = 'input window, operand 0']
    #allocation4 [shape = 's32[2]{0}', space=sflag, size = 0x8, scoped, tag = 'scoped memory for tpu_custom_call.1']
    %7 = vsyncpa [#allocation4], 0
    %s8 = scalar_lea.sflag [#allocation4], 1
    %9 = vsyncpa %s8, 0
    loop: start=0, step=1, limit=4
    $region2: #{tpu_custom_call.1} parent=1 // loop_pre_header
      _
    $region3: #{tpu_custom_call.1} parent=1 // loop_header
      %s11 = sphi 0, %s15
      %p12 = scmp.ge.s32.totalorder %s11, 4
      %s18 = sphi 0, %s30
      %s19 = sphi 0, %s26
      %s20 = sphi 0, %s18
      %s21 = sphi 0, %s19
      %s22 = sphi 0, %s20
      %s23 = sphi 0, %s21
      %s35 = sphi 0, %s37
      %s38 = sphi 0, %s35
      %s39 = sphi 0, %s38
      %s55 = sphi 0, %s39
      %s63 = sphi 0, %s65
      %s66 = sphi 0, %s63
      %s67 = sphi 0, %s66
      %s83 = sphi 0, %s67
      %s89 = sphi 0, %s91
      %s92 = sphi 0, %s89
      %s93 = sphi 0, %s92
      %s109 = sphi 0, %s93
    $region4: #{tpu_custom_call.1} parent=1 // loop_header_branch
      %14 = sbr.rel (%p12) target = $region8
    $region5: #{tpu_custom_call.1} parent=1 // loop_body
      %s16 = ssub.s32 %s11, 1
      %s17 = ssub.s32 %s11, 2
      %s24 = sadd.s32 1, %s19
      %p25 = scmp.ge.s32.totalorder %s24, 1
      %s26 = scalar_select %p25, 0, %s24
      %s27 = sadd.s32 1, %s18
      %s28 = scalar_select %p25, %s27, %s18
      %p29 = scmp.ge.s32.totalorder %s28, 2
      %s30 = scalar_select %p29, 0, %s28
      %s31 = ssub.s32 %s18, %s30
      %s32 = ssub.s32 %s19, %s26
      %s33 = sor.u32 %s31, %s32
      %p34 = scmp.eq.s32.totalorder %s33, 0
      %s36 = sadd.s32 %s35, 1
      %s37 = scalar_select %p34, %s35, %s36
      %p40 = pneg %p34
      %p41 = scmp.eq.s32.totalorder %s11, 1
      %p42 = por %p40, %p41
      %p43 = scmp.ne.s32.totalorder %s35, %s38
      %p44 = scmp.eq.s32.totalorder %s11, 0
      %p45 = por %p43, %p44
      %p46 = scmp.ne.s32.totalorder %s35, %s38
      %p47 = scmp.eq.s32.totalorder %s16, 1
      %p48 = por %p46, %p47
      %p49 = scmp.ne.s32.totalorder %s38, %s39
      %p50 = scmp.eq.s32.totalorder %s16, 0
      %p51 = por %p49, %p50
      %p52 = scmp.ne.s32.totalorder %s38, %s39
      %p53 = scmp.eq.s32.totalorder %s17, 1
      %p54 = por %p52, %p53
      %p56 = scmp.ne.s32.totalorder %s39, %s55
      %p57 = scmp.eq.s32.totalorder %s17, 0
      %p58 = por %p56, %p57
      %s59 = ssub.s32 %s18, %s30
      %s60 = ssub.s32 %s19, %s26
      %s61 = sor.u32 %s59, %s60
      %p62 = scmp.eq.s32.totalorder %s61, 0
      %s64 = sadd.s32 %s63, 1
      %s65 = scalar_select %p62, %s63, %s64
      %p68 = pneg %p62
      %p69 = scmp.eq.s32.totalorder %s11, 1
      %p70 = por %p68, %p69
      %p71 = scmp.ne.s32.totalorder %s63, %s66
      %p72 = scmp.eq.s32.totalorder %s11, 0
      %p73 = por %p71, %p72
      %p74 = scmp.ne.s32.totalorder %s63, %s66
      %p75 = scmp.eq.s32.totalorder %s16, 1
      %p76 = por %p74, %p75
      %p77 = scmp.ne.s32.totalorder %s66, %s67
      %p78 = scmp.eq.s32.totalorder %s16, 0
      %p79 = por %p77, %p78
      %p80 = scmp.ne.s32.totalorder %s66, %s67
      %p81 = scmp.eq.s32.totalorder %s17, 1
      %p82 = por %p80, %p81
      %p84 = scmp.ne.s32.totalorder %s67, %s83
      %p85 = scmp.eq.s32.totalorder %s17, 0
      %p86 = por %p84, %p85
      %s87 = ssub.s32 %s18, %s30
      %p88 = scmp.eq.s32.totalorder %s87, 0
      %s90 = sadd.s32 %s89, 1
      %s91 = scalar_select %p88, %s89, %s90
      %p94 = pneg %p88
      %p95 = scmp.eq.s32.totalorder %s11, 1
      %p96 = por %p94, %p95
      %p97 = scmp.ne.s32.totalorder %s89, %s92
      %p98 = scmp.eq.s32.totalorder %s11, 0
      %p99 = por %p97, %p98
      %p100 = scmp.ne.s32.totalorder %s89, %s92
      %p101 = scmp.eq.s32.totalorder %s16, 1
      %p102 = por %p100, %p101
      %p103 = scmp.ne.s32.totalorder %s92, %s93
      %p104 = scmp.eq.s32.totalorder %s16, 0
      %p105 = por %p103, %p104
      %p106 = scmp.ne.s32.totalorder %s92, %s93
      %p107 = scmp.eq.s32.totalorder %s17, 1
      %p108 = por %p106, %p107
      %p110 = scmp.ne.s32.totalorder %s93, %s109
      %p111 = scmp.eq.s32.totalorder %s17, 0
      %p112 = por %p110, %p111
      %p113 = scmp.le.s32.totalorder 1, %s11
      %p114 = scmp.lt.s32.totalorder %s11, 3
      %p115 = pnand %p113, %p114
      %p116 = pneg %p115
      // Predicated region
      $region9: #{tpu_custom_call.1} parent=5 // pred_check
        _
      $region10: #{tpu_custom_call.1} parent=5 // pred_check_branch
        %118 = sbr.rel (%p115) target = $region12
      $region11: #{tpu_custom_call.1} parent=5 // pred_region
        %s119 = ssub.s32 %s11, 1
      $region12: #{tpu_custom_call.1} parent=5 // pred_fallthru
        _
      %p120 = scmp.lt.s32.totalorder %s11, 2
      // Predicated region
      $region13: #{tpu_custom_call.1} parent=5 // pred_check
        %p121 = pneg %p120
      $region14: #{tpu_custom_call.1} parent=5 // pred_check_branch
        %123 = sbr.rel (%p121) target = $region16
      $region15: #{tpu_custom_call.1} parent=5 // pred_region
        // Predicated region
        $region17: #{tpu_custom_call.1} parent=15 // pred_check
          %p124 = pneg %p45
        $region18: #{tpu_custom_call.1} parent=15 // pred_check_branch
          %126 = sbr.rel (%p124) target = $region20
        $region19: #{tpu_custom_call.1} parent=15 // pred_region
          %s127 = sand.u32 %s35, 1
          %s128 = scalar_lea.sflag [#allocation4], %s127
          %s129 = sand.u32 %s35, 1
          %s130 = smul.addr %s129, 32
          %s131 = scalar_lea.vmem [#allocation3], %s130
          %s133 = ssub.s32 512, 512
          %134 = vsyncadd %s128, %s133
          %s135 = smul.addr %s18, 4
          %s136 = sadd.s32 %s19, %s135
          %s137 = smul.addr %s136, 128
          %s138 = scalar_lea.hbm %s0, %s137
          %s139 = sshll.u32 %s131, 4
          %s140 = int_to_ptr.vmem [resolvable:$true] %s139
          %145 = dma.hbm_to_vmem [thread:$0]  %s138, 512, %s140, %s128, 128, 128, 8
        $region20: #{tpu_custom_call.1} parent=15 // pred_fallthru
          _
        // Predicated region
        $region21: #{tpu_custom_call.1} parent=15 // pred_check
          %p146 = pneg %p73
        $region22: #{tpu_custom_call.1} parent=15 // pred_check_branch
          %148 = sbr.rel (%p146) target = $region24
        $region23: #{tpu_custom_call.1} parent=15 // pred_region
          %p149 = scmp.lt.s32.totalorder %s18, 1
          %s150 = scalar_select %p149, %s18, 1
          %p151 = scmp.lt.s32.totalorder %s19, 0
          %s152 = scalar_select %p151, %s19, 0
          %s153 = sadd.s32 %s152, %s150
          %s154 = scalar_lea.vmem %s1, %s153
        $region24: #{tpu_custom_call.1} parent=15 // pred_fallthru
          _
      $region16: #{tpu_custom_call.1} parent=5 // pred_fallthru
        _
      %p155 = scmp.le.s32.totalorder 1, %s11
      %p156 = scmp.lt.s32.totalorder %s11, 3
      %p157 = pnand %p155, %p156
      %p158 = pneg %p157
      // Predicated region
      $region25: #{tpu_custom_call.1} parent=5 // pred_check
        _
      $region26: #{tpu_custom_call.1} parent=5 // pred_check_branch
        %160 = sbr.rel (%p157) target = $region28
      $region27: #{tpu_custom_call.1} parent=5 // pred_region
        %s161 = ssub.s32 %s11, 1
        %s162 = sand.u32 %s38, 1
        %s163 = scalar_lea.sflag [#allocation4], %s162
        %s164 = sand.u32 %s38, 1
        %s165 = smul.addr %s164, 32
        %s166 = scalar_lea.vmem [#allocation3], %s165
        // Predicated region
        $region29: #{tpu_custom_call.1} parent=27 // pred_check
          %p167 = pneg %p51
        $region30: #{tpu_custom_call.1} parent=27 // pred_check_branch
          %169 = sbr.rel (%p167) target = $region32
        $region31: #{tpu_custom_call.1} parent=27 // pred_region
          %170 = dma.done %s163, 512
        $region32: #{tpu_custom_call.1} parent=27 // pred_fallthru
          _
        %s171 = sand.u32 %s38, 1
        %s172 = scalar_lea.sflag [#allocation4], %s171
        %s173 = sand.u32 %s38, 1
        %s174 = smul.addr %s173, 32
        %s175 = scalar_lea.vmem [#allocation3], %s174
        %p176 = pneg %p51
        %p177 = pneg %p48
        %p178 = scmp.lt.s32.totalorder %s20, 1
        %s179 = scalar_select %p178, %s20, 1
        %p180 = scmp.lt.s32.totalorder %s21, 0
        %s181 = scalar_select %p180, %s21, 0
        %s182 = sadd.s32 %s181, %s179
        %s183 = scalar_lea.vmem %s1, %s182
        %p184 = pneg %p79
        %p185 = pneg %p76
        %p186 = pneg %p105
        %p187 = pneg %p102
        %p188 = scmp.lt.s32.totalorder %s20, 1
        %s189 = scalar_select %p188, %s20, 1
        %s190 = scalar_lea.vmem %s2, %s189
        %p191 = scmp.lt.s32.totalorder %s20, 1
        %s192 = scalar_select %p191, %s20, 1
        %p193 = scmp.lt.s32.totalorder %s21, 0
        %s194 = scalar_select %p193, %s21, 0
        %s195 = sadd.s32 %s194, %s192
        %s196 = scalar_lea.vmem %s1, %s195
        %p197 = scmp.lt.s32.totalorder %s20, 1
        %s198 = scalar_select %p197, %s20, 1
        %s199 = scalar_lea.vmem %s2, %s198
        %p200 = scmp.eq.s32.totalorder %s21, 0
        // Predicated region
        $region33: #{tpu_custom_call.1} parent=27 // pred_check
          %p201 = pneg %p200
        $region34: #{tpu_custom_call.1} parent=27 // pred_check_branch
          %203 = sbr.rel (%p201) target = $region36
        $region35: #{tpu_custom_call.1} parent=27 // pred_region
          %vm204 = vcmask 516096
          %205 = vst.msk [vmem:[#allocation2] sm:$0x1] %vm204, 0.0
        $region36: #{tpu_custom_call.1} parent=27 // pred_fallthru
          _
        %v206 = vld [vmem:[%s166] sm:$0xff]
        %v207 = vld [vmem:[%s166 + $0x8] sm:$0xff]
        %v208 = vld [vmem:[%s166 + $0x10] sm:$0xff]
        %v209 = vld [vmem:[%s166 + $0x18] sm:$0xff]
        %v210 = vld [vmem:[%s196] sm:$0x1]
        %vm211 = vcmask 523264
        %v212 = vsel %vm211, %v206, -inf
        %v213 = vsel %vm211, %v207, -inf
        %v214 = vsel %vm211, %v208, -inf
        %v215 = vsel %vm211, %v209, -inf
        %v216 = vmax.f32 %v212, %v213
        %v217 = vmax.f32 %v214, %v215
        %v218 = vmax.f32 %v216, %v217
        %v219 = vrot.slane %v218, 4
        %v220 = vmax.f32 %v218, %v219
        %v221 = vrot.slane %v220, 2
        %v222 = vmax.f32 %v220, %v221
        %v223 = vrot.slane %v222, 1
        %v224 = vmax.f32 %v222, %v223
        %v225 = vsub.f32 %v206, %v224
        %v226 = vsub.f32 %v207, %v224
        %v227 = vsub.f32 %v208, %v224
        %v228 = vsub.f32 %v209, %v224
        %v229 = vmul.f32 %v225, 1.442695
        %v230 = vpow.pop %v229
        %v231 = vmul.f32 %v226, 1.442695
        %v232 = vpow.pop %v231
        %v233 = vmul.f32 %v227, 1.442695
        %v234 = vpow.pop %v233
        %v235 = vmul.f32 %v228, 1.442695
        %v236 = vpow.pop %v235
        %v237 = vsel %vm211, %v230, 0.0
        %v238 = vsel %vm211, %v232, 0.0
        %v239 = vadd.f32 %v237, %v238
        %v240 = vsel %vm211, %v234, 0.0
        %v241 = vadd.f32 %v239, %v240
        %v242 = vsel %vm211, %v236, 0.0
        %v243 = vadd.f32 %v241, %v242
        %v244 = vrot.slane %v243, 4
        %v245 = vadd.f32 %v243, %v244
        %v246 = vrot.slane %v245, 2
        %v247 = vadd.f32 %v245, %v246
        %v248 = vrot.slane %v247, 1
        %v249 = vadd.f32 %v247, %v248
        %v250 = vlog2.pop %v249
        %v251 = vmul.f32 %v250, 0.6931472
        %v252 = vadd.f32 %v251, %v224
        %v253 = vsel %vm211, %v206, 0.0
        %v254 = vsel %vm211, %v207, 0.0
        %v255 = vadd.f32 %v253, %v254
        %v256 = vsel %vm211, %v208, 0.0
        %v257 = vadd.f32 %v255, %v256
        %v258 = vsel %vm211, %v209, 0.0
        %v259 = vadd.f32 %v257, %v258
        %v260 = vrot.slane %v259, 4
        %v261 = vadd.f32 %v259, %v260
        %v262 = vrot.slane %v261, 2
        %v263 = vadd.f32 %v261, %v262
        %v264 = vrot.slane %v263, 1
        %v265 = vadd.f32 %v263, %v264
        %v266 = vmul.f32 %v252, 32.0
        %v267 = vsub.f32 %v265, %v266
        %v268 = vlaneseq
        %v269 = vshrl.u32 %v268, 7
        %v270 = vadd.s32 %v269, 8
        %v271 = vadd.s32 %v269, 16
        %v272 = vadd.s32 %v269, 24
        %v273 = vlaneseq
        %v274 = vshrl.u32 %v273, 7
        %v275 = vsub.s32 0, %v274
        %v276 = vrot.slane %v210, %v275
        %vm277 = vcmp.eq.s32.totalorder %v269, %v276
        %vm278 = vcmp.eq.s32.totalorder %v270, %v276
        %vm279 = vcmp.eq.s32.totalorder %v271, %v276
        %vm280 = vcmp.eq.s32.totalorder %v272, %v276
        %v281 = vsel %vm277, %v206, 0.0
        %v282 = vsel %vm278, %v207, 0.0
        %v283 = vsel %vm279, %v208, 0.0
        %v284 = vsel %vm280, %v209, 0.0
        %v285 = vsel %vm211, %v281, 0.0
        %v286 = vsel %vm211, %v282, 0.0
        %v287 = vadd.f32 %v285, %v286
        %v288 = vsel %vm211, %v283, 0.0
        %v289 = vadd.f32 %v287, %v288
        %v290 = vsel %vm211, %v284, 0.0
        %v291 = vadd.f32 %v289, %v290
        %v292 = vrot.slane %v291, 4
        %v293 = vadd.f32 %v291, %v292
        %v294 = vrot.slane %v293, 2
        %v295 = vadd.f32 %v293, %v294
        %v296 = vrot.slane %v295, 1
        %v297 = vadd.f32 %v295, %v296
        %v298 = vsub.f32 %v297, %v252
        %v299 = vmul.f32 %v267, 0.003125
        %v300 = vmul.f32 %v298, 0.896875
        %v301 = vadd.f32 %v299, %v300
        %vm302 = vcmp.eq.s32.totalorder %v269, 3
        %vm303 = vcmp.eq.s32.totalorder %v270, 3
        %vm304 = vcmp.eq.s32.totalorder %v271, 3
        %vm305 = vcmp.eq.s32.totalorder %v272, 3
        %v306 = vsel %vm302, %v206, 0.0
        %v307 = vsel %vm303, %v207, 0.0
        %v308 = vsel %vm304, %v208, 0.0
        %v309 = vsel %vm305, %v209, 0.0
        %v310 = vsel %vm211, %v306, 0.0
        %v311 = vsel %vm211, %v307, 0.0
        %v312 = vadd.f32 %v310, %v311
        %v313 = vsel %vm211, %v308, 0.0
        %v314 = vadd.f32 %v312, %v313
        %v315 = vsel %vm211, %v309, 0.0
        %v316 = vadd.f32 %v314, %v315
        %v317 = vrot.slane %v316, 4
        %v318 = vadd.f32 %v316, %v317
        %v319 = vrot.slane %v318, 2
        %v320 = vadd.f32 %v318, %v319
        %v321 = vrot.slane %v320, 1
        %v322 = vadd.f32 %v320, %v321
        %v323 = vsub.f32 %v322, %v252
        %v324 = vmul.f32 %v323, 0.003125
        %v325 = vsub.f32 %v301, %v324
        %v326 = vsub.f32 -0.63560456, %v325
        %vm327 = vcmp.eq.s32.totalorder %v210, 3
        %v328 = vsel %vm327, 0.0, %v326
        %v329 = vld [vmem:[#allocation2] sm:$0x1]
        %v330 = vadd.f32 %v329, %v328
        %vm331 = vcmask 516096
        %332 = vst.msk [vmem:[#allocation2] sm:$0x1] %vm331, %v330
        // Predicated region
        $region37: #{tpu_custom_call.1} parent=27 // pred_check
          %p333 = pneg %p200
        $region38: #{tpu_custom_call.1} parent=27 // pred_check_branch
          %335 = sbr.rel (%p333) target = $region40
        $region39: #{tpu_custom_call.1} parent=27 // pred_region
          %v336 = vld [vmem:[#allocation2] sm:$0x1]
          %v337 = vsel %vm331, %v336, 0.0
          %338 = vadd.xlane.f32.xlu0 %v337
          %v339 = vpop.xlane.xlu0 %338
          %v340 = vrot.slane %v339, 4
          %v341 = vadd.f32 %v339, %v340
          %v342 = vrot.slane %v341, 2
          %v343 = vadd.f32 %v341, %v342
          %v344 = vrot.slane %v343, 1
          %v345 = vadd.f32 %v343, %v344
          %s346 = vtos %v345
          %v347 = vstv %s346
          %vm348 = vcmask 0
          %349 = vst.msk [vmem:[%s199] sm:$0x1] %vm348, %v347
        $region40: #{tpu_custom_call.1} parent=27 // pred_fallthru
          _
        %p350 = scmp.lt.s32.totalorder %s20, 1
        %s351 = scalar_select %p350, %s20, 1
        %s352 = scalar_lea.vmem %s2, %s351
        // Predicated region
        $region41: #{tpu_custom_call.1} parent=27 // pred_check
          %p353 = pneg %p102
        $region42: #{tpu_custom_call.1} parent=27 // pred_check_branch
          %355 = sbr.rel (%p353) target = $region44
        $region43: #{tpu_custom_call.1} parent=27 // pred_region
          _
        $region44: #{tpu_custom_call.1} parent=27 // pred_fallthru
          _
      $region28: #{tpu_custom_call.1} parent=5 // pred_fallthru
        _
      %p356 = scmp.le.s32.totalorder 2, %s11
      // Predicated region
      $region45: #{tpu_custom_call.1} parent=5 // pred_check
        %p357 = pneg %p356
      $region46: #{tpu_custom_call.1} parent=5 // pred_check_branch
        %359 = sbr.rel (%p357) target = $region48
      $region47: #{tpu_custom_call.1} parent=5 // pred_region
        %s360 = ssub.s32 %s11, 2
        // Predicated region
        $region49: #{tpu_custom_call.1} parent=47 // pred_check
          %p361 = pneg %p108
        $region50: #{tpu_custom_call.1} parent=47 // pred_check_branch
          %363 = sbr.rel (%p361) target = $region52
        $region51: #{tpu_custom_call.1} parent=47 // pred_region
          %p364 = scmp.lt.s32.totalorder %s22, 1
          %s365 = scalar_select %p364, %s22, 1
          %s366 = scalar_lea.vmem %s2, %s365
        $region52: #{tpu_custom_call.1} parent=47 // pred_fallthru
          _
      $region48: #{tpu_custom_call.1} parent=5 // pred_fallthru
        _
    $region6: #{tpu_custom_call.1} parent=1 // loop_footer
      %s15 = sadd.s32 1, %s11
    $region7: #{tpu_custom_call.1} parent=1 // loop_footer_branch
      %10 = sbr.rel target = $region3
    $region8: #{tpu_custom_call.1} parent=1 // loop_exit
      _
    %367 = vsyncpa [#allocation4], 1
    %s368 = scalar_lea.sflag [#allocation4], 1
    %369 = vsyncpa %s368, 1

</llo_original>
